<compile_context>
chip_gen: v7x
topology: tpu7x:2x2x1
jax: 0.10.0
libtpu: 0.0.40
codegen_flags: <defaults>
</compile_context>

<pallas_src>
import functools

import numpy as np
import jax
import jax.numpy as jnp
from jax.experimental import pallas as pl
from jax.experimental.pallas import tpu as pltpu


# ----------------------------------------------------------------------------
# helpers / generation-aware budgets
# ----------------------------------------------------------------------------
def _round_up(x, m):
    return (x + m - 1) // m * m


def _cdiv(a, b):
    return -(-a // b)


def _pick_divisor(n, cap):
    """Largest divisor of n that is <= cap (at least 1)."""
    cap = max(1, min(cap, n))
    for d in range(cap, 0, -1):
        if n % d == 0:
            return d
    return 1


def _vmem_capacity_bytes():
    try:
        info = pltpu.get_tpu_info()
        cap = getattr(info, "vmem_capacity_bytes", None)
        if cap:
            return int(cap)
    except Exception:
        pass
    return 64 << 20  # conservative (v7x-sized) fallback


_VMEM_CAP = _vmem_capacity_bytes()
_BIG_VMEM = _VMEM_CAP >= (100 << 20)          # v5e / v6e: 128 MiB; v7x: 64 MiB
_VMEM_LIMIT = (64 << 20) if _BIG_VMEM else (40 << 20)
_TILE_BUDGET = _VMEM_LIMIT // 3               # rough per-kernel tile-sizing budget
_TM_1x1_TARGET = 4096 if _BIG_VMEM else 2048
_ROWS_3x3_TARGET = 4096 if _BIG_VMEM else 2048


# ----------------------------------------------------------------------------
# Pallas kernels
# ----------------------------------------------------------------------------
def _mm_bias_kernel(x_ref, w_ref, b_ref, o_ref):
    """1x1 conv tile: (TM, Cin)bf16 @ (Cin, Cout)bf16 + bias(f32) -> out tile."""
    acc = jnp.dot(x_ref[...], w_ref[...], preferred_element_type=jnp.float32)
    o_ref[...] = (acc + b_ref[...]).astype(o_ref.dtype)


def _conv3x3_kernel(x_hbm, w_ref, b_ref, o_ref, xbuf, sem, *, TH, W, HB):
    """3x3 conv (stride 1, pad 1) on one halo'd row tile, double-buffered DMA.

    x_hbm: (N, Hp+2, Wf, Cin) padded input, left in HBM (pl.ANY)
    w_ref: (3, 3*Cin, Cout) bf16 weights (per-dy taps concatenated along K)
    b_ref: (1, Cout) f32 bias
    o_ref: (TH*W, Cout) flat, lane-dense output tile
    xbuf : VMEM scratch (2, 1, TH+2, Wf, Cin) bf16 (double buffer)
    sem  : DMA semaphores, shape (2,)
    """
    s = pl.program_id(0)
    ns = pl.num_programs(0)
    slot = s % 2

    def halo_copy(step, slot_):
        n = step // HB
        r = step - n * HB
        return pltpu.make_async_copy(
            x_hbm.at[pl.ds(n, 1), pl.ds(r * TH, TH + 2), :, :],
            xbuf.at[slot_], sem.at[slot_])

    # prime slot 0 on the very first grid step
    @pl.when(s == 0)
    def _():
        halo_copy(s, slot).start()

    # prefetch next step's halo tile into the other slot (overlaps with compute)
    @pl.when(s + 1 < ns)
    def _():
        halo_copy(s + 1, 1 - slot).start()

    # wait for the current tile
    halo_copy(s, slot).wait()

    cin = xbuf.shape[-1]
    cout = o_ref.shape[-1]

    # 3 sublane-shifted slabs (one per dx), sliced straight off the Ref and
    # concatenated along channels -> per-dy accumulation is one K=3*Cin MXU dot.
    xcat = jnp.concatenate(
        [xbuf[slot, 0, :, dx:dx + W, :] for dx in range(3)], axis=-1)

    acc = jnp.dot(xcat[0:TH].reshape(TH * W, 3 * cin), w_ref[0],
                  preferred_element_type=jnp.float32)
    for dy in range(1, 3):
        acc = acc + jnp.dot(xcat[dy:dy + TH].reshape(TH * W, 3 * cin),
                            w_ref[dy], preferred_element_type=jnp.float32)
    o_ref[...] = (acc + b_ref[...]).astype(o_ref.dtype)


def _upsample_add_kernel(fine_ref, coarse_ref, o_ref, *, fy, fx):
    """fine tile (tcr*fy, W, C) + nearest-repeat of coarse tile (tcr, W//fx, C)."""
    up = coarse_ref[...]
    if fx > 1:
        up = jnp.repeat(up, fx, axis=1)              # column (sublane) repeat
    if fy > 1:
        up = jnp.repeat(up, fy, axis=0)              # row (major-axis) repeat
    o_ref[...] = (fine_ref[...].astype(jnp.float32)
                  + up.astype(jnp.float32)).astype(o_ref.dtype)


# ----------------------------------------------------------------------------
# Pallas wrappers
# ----------------------------------------------------------------------------
def conv1x1_nhwc(x, w, b, out_dtype=jnp.bfloat16, tm_target=None):
    """x: (N,H,W,Cin), w: (Cin,Cout), b: (Cout,) -> (N,H,W,Cout)."""
    N, H, W, Cin = x.shape
    Cout = w.shape[-1]
    M = N * H * W
    if tm_target is None:
        tm_target = _TM_1x1_TARGET

    out_bytes = jnp.dtype(out_dtype).itemsize
    # VMEM per output row (double-buffered in/out blocks + f32 acc)
    per_row = 2 * Cin * 2 + 2 * Cout * out_bytes + Cout * 4
    cap = max(8, (_TILE_BUDGET // per_row) // 8 * 8)
    TM = max(8, min(tm_target, cap, _round_up(M, 8)))
    Mp = _round_up(M, TM)

    x2 = x.reshape(M, Cin).astype(jnp.bfloat16)
    if Mp != M:
        x2 = jnp.pad(x2, ((0, Mp - M), (0, 0)))
    wq = w.astype(jnp.bfloat16)
    b2 = b.reshape(1, Cout).astype(jnp.float32)

    # TODO(synk): single-buffer the resident weight/bias blocks
    # (pipeline_mode=pl.Buffered(1)) to free a little VMEM on v7x.
    out = pl.pallas_call(
        _mm_bias_kernel,
        out_shape=jax.ShapeDtypeStruct((Mp, Cout), out_dtype),
        grid_spec=pltpu.PrefetchScalarGridSpec(
            num_scalar_prefetch=0,
            grid=(Mp // TM,),
            in_specs=[
                pl.BlockSpec((TM, Cin), lambda i: (i, 0)),
                pl.BlockSpec((Cin, Cout), lambda i: (0, 0)),   # weights resident
                pl.BlockSpec((1, Cout), lambda i: (0, 0)),
            ],
            out_specs=pl.BlockSpec((TM, Cout), lambda i: (i, 0)),
        ),
        compiler_params=pltpu.CompilerParams(
            dimension_semantics=("parallel",),
            vmem_limit_bytes=_VMEM_LIMIT),
    )(x2, wq, b2)
    return out[:M].reshape(N, H, W, Cout)


def conv3x3_nhwc(x, w, b, out_dtype=jnp.float32, rows_target=None):
    """3x3 conv, stride 1, padding 1. x: (N,H,W,Cin), w: (3,3,Cin,Cout)."""
    N, H, W, Cin = x.shape
    Cout = w.shape[-1]
    if rows_target is None:
        rows_target = _ROWS_3x3_TARGET
    out_bytes = jnp.dtype(out_dtype).itemsize

    Wp = _round_up(W, 8)                       # sublane-aligned output width
    Wf = Wp + 8                                # halo (+1/+1) padded to 8-multiple

    # VMEM-driven cap on output rows per tile.
    per_row = (2 * Wp * Cout * out_bytes       # double-buffered output blocks
               + 2 * Wf * Cin * 2              # double-buffered halo input
               + Wp * 3 * Cin * 2              # concatenated tap slab
               + Wp * Cout * 4)                # f32 accumulator
    rows_cap = max(1, _TILE_BUDGET // per_row)
    TH = max(1, min(H, max(1, rows_target // Wp), rows_cap))

    HB = _cdiv(H, TH)
    # v7x has 2 TensorCores: avoid a degenerate 1-step "parallel" grid.
    if N * HB < 2 and TH > 1:
        TH = _cdiv(TH, 2)
        HB = _cdiv(H, TH)
    Hp = HB * TH

    # zero pad: +1 halo top/left (conv padding), bottom/right up to (Hp+1, Wf-1)
    xp = jnp.pad(x.astype(jnp.bfloat16),
                 ((0, 0), (1, Hp - H + 1), (1, Wf - W - 1), (0, 0)))
    # per-dy taps concatenated along K: w3[dy, dx*Cin + cin, cout]
    w3 = w.reshape(3, 3 * Cin, Cout).astype(jnp.bfloat16)
    b2 = b.reshape(1, Cout).astype(jnp.float32)

    # TODO(synk): fuse the top-down upsample+add into this kernel's input path
    # (DMA the coarse tile alongside the halo tile) to save one HBM round trip
    # per merged lateral level.
    out = pl.pallas_call(
        functools.partial(_conv3x3_kernel, TH=TH, W=Wp, HB=HB),
        out_shape=jax.ShapeDtypeStruct((N * Hp * Wp, Cout), out_dtype),
        grid_spec=pltpu.PrefetchScalarGridSpec(
            num_scalar_prefetch=0,
            grid=(N * HB,),
            in_specs=[
                pl.BlockSpec(memory_space=pl.ANY),                      # halo-DMA'd
                pl.BlockSpec((3, 3 * Cin, Cout), lambda s: (0, 0, 0)),  # resident
                pl.BlockSpec((1, Cout), lambda s: (0, 0)),
            ],
            out_specs=pl.BlockSpec((TH * Wp, Cout), lambda s: (s, 0)),
            scratch_shapes=[
                pltpu.VMEM((2, 1, TH + 2, Wf, Cin), jnp.bfloat16),
                pltpu.SemaphoreType.DMA((2,)),
            ],
        ),
        compiler_params=pltpu.CompilerParams(
            dimension_semantics=("parallel",),
            vmem_limit_bytes=_VMEM_LIMIT),
    )(xp, w3, b2)
    out = out.reshape(N, Hp, Wp, Cout)
    return out[:, :H, :W, :]


def upsample_add_nhwc(fine, coarse):
    """fine + F.interpolate(coarse, size=fine.shape[1:3], mode='nearest')."""
    N, H, W, C = fine.shape
    _, h, w, _ = coarse.shape
    if H % h == 0 and W % w == 0:
        fy, fx = H // h, W // w
        cw = coarse                                  # expanded in-kernel
        hc, wc = h, w
    else:
        # general PyTorch 'nearest' with size=: src = floor(dst * in / out)
        iy = (jnp.arange(H) * h) // H
        ix = (jnp.arange(W) * w) // W
        cw = coarse[:, iy][:, :, ix]                 # (N,H,W,C)
        fy, fx = 1, 1
        hc, wc = H, W

    tcr = _pick_divisor(hc, max(1, (1 << 20) // max(1, W * C * fy)))
    hb = hc // tcr

    return pl.pallas_call(
        functools.partial(_upsample_add_kernel, fy=fy, fx=fx),
        out_shape=jax.ShapeDtypeStruct((N, H, W, C), fine.dtype),
        grid_spec=pltpu.PrefetchScalarGridSpec(
            num_scalar_prefetch=0,
            grid=(N, hb),
            in_specs=[
                pl.BlockSpec((None, tcr * fy, W, C), lambda n, rb: (n, rb, 0, 0)),
                pl.BlockSpec((None, tcr, wc, C), lambda n, rb: (n, rb, 0, 0)),
            ],
            out_specs=pl.BlockSpec((None, tcr * fy, W, C),
                                   lambda n, rb: (n, rb, 0, 0)),
        ),
        compiler_params=pltpu.CompilerParams(
            dimension_semantics=("parallel", "parallel"),
            vmem_limit_bytes=_VMEM_LIMIT),
    )(fine, cw)


# ----------------------------------------------------------------------------
# FPN module (default config: add_extra_convs=False, start_level=0, end_level=-1)
# ----------------------------------------------------------------------------
class FPNPallas:
    def __init__(self, in_channels, out_channels=256, num_outs=4, key=None):
        self.in_channels = list(in_channels)
        self.out_channels = out_channels
        self.num_outs = num_outs
        if key is None:
            key = jax.random.PRNGKey(0)
        self.params = {}
        for i, cin in enumerate(self.in_channels):
            key, k1, k2, k3, k4 = jax.random.split(key, 5)
            self.params[f"lat_w_{i}"] = (
                jax.random.normal(k1, (cin, out_channels), jnp.float32)
                / np.sqrt(cin))
            self.params[f"lat_b_{i}"] = (
                jax.random.normal(k2, (out_channels,), jnp.float32) * 0.01)
            self.params[f"fpn_w_{i}"] = (
                jax.random.normal(k3, (3, 3, out_channels, out_channels),
                                  jnp.float32) / np.sqrt(9 * out_channels))
            self.params[f"fpn_b_{i}"] = (
                jax.random.normal(k4, (out_channels,), jnp.float32) * 0.01)
        # TODO(synk): add_extra_convs != False (extra stride-2 3x3 convs) is not
        # exercised by the default config and is not implemented.

    def __call__(self, inputs_nchw):
        assert len(inputs_nchw) == len(self.in_channels)
        xs = [jnp.transpose(x, (0, 2, 3, 1)) for x in inputs_nchw]  # NCHW->NHWC

        # lateral 1x1 convs (bf16 matmul, bf16 laterals)
        laterals = [
            conv1x1_nhwc(xs[i], self.params[f"lat_w_{i}"],
                         self.params[f"lat_b_{i}"])
            for i in range(len(xs))
        ]

        # top-down pathway: fused nearest-upsample (row+col in-kernel) + add
        used = len(laterals)
        for i in range(used - 1, 0, -1):
            laterals[i - 1] = upsample_add_nhwc(laterals[i - 1], laterals[i])

        # fpn 3x3 convs (double-buffered halo DMA, 3x K=3*Cin MXU taps)
        outs = [
            conv3x3_nhwc(laterals[i], self.params[f"fpn_w_{i}"],
                         self.params[f"fpn_b_{i}"])
            for i in range(used)
        ]

        # extra outputs: F.max_pool2d(x, 1, stride=2) == stride-2 subsampling
        if self.num_outs > used:
            for _ in range(self.num_outs - used):
                outs.append(outs[-1][:, ::2, ::2, :])

        return tuple(jnp.transpose(o, (0, 3, 1, 2)) for o in outs)  # NHWC->NCHW


# ----------------------------------------------------------------------------
# Pure-JAX reference (XLA convs, NCHW) mirroring the kernel's bf16 quantization
# ----------------------------------------------------------------------------
def _q(a):
    return a.astype(jnp.bfloat16).astype(jnp.float32)


def _ref_conv_nchw(x, w_oihw, b, padding):
    out = jax.lax.conv_general_dilated(
        x, w_oihw, (1, 1), [(padding, padding), (padding, padding)],
        dimension_numbers=("NCHW", "OIHW", "NCHW"),
        precision=jax.lax.Precision.HIGHEST)
    return out + b.reshape(1, -1, 1, 1)


def _ref_fpn(inputs_nchw, module: FPNPallas):
    p = module.params
    n_lvls = len(inputs_nchw)
    laterals = []
    for i, x in enumerate(inputs_nchw):
        w = jnp.transpose(p[f"lat_w_{i}"], (1, 0))[:, :, None, None]   # OIHW
        laterals.append(_q(_ref_conv_nchw(_q(x), _q(w), p[f"lat_b_{i}"], 0)))
    for i in range(n_lvls - 1, 0, -1):
        H, W = laterals[i - 1].shape[2:]
        h, w = laterals[i].shape[2:]
        up = jnp.repeat(jnp.repeat(laterals[i], H // h, axis=2), W // w, axis=3)
        laterals[i - 1] = _q(laterals[i - 1] + up)
    outs = []
    for i in range(n_lvls):
        w = jnp.transpose(p[f"fpn_w_{i}"], (3, 2, 0, 1))               # OIHW
        outs.append(_ref_conv_nchw(laterals[i], _q(w), p[f"fpn_b_{i}"], 1))
    while len(outs) < module.num_outs:
        outs.append(outs[-1][:, :, ::2, ::2])
    return tuple(outs)


# ----------------------------------------------------------------------------
if __name__ == "__main__":
    key = jax.random.PRNGKey(0)
    in_channels = [4, 8, 16]
    out_channels = 32
    num_outs = 4
    N = 2
    spatials = [16, 8, 4]

    keys = jax.random.split(key, len(in_channels) + 1)
    inputs = [
        jax.random.normal(keys[i],
                          (N, in_channels[i], spatials[i], spatials[i]),
                          jnp.float32)
        for i in range(len(in_channels))
    ]

    fpn = FPNPallas(in_channels, out_channels=out_channels, num_outs=num_outs,
                    key=keys[-1])

    outs = jax.block_until_ready(fpn(inputs))
    refs = jax.block_until_ready(_ref_fpn(inputs, fpn))

    assert len(outs) == num_outs
    expected_shapes = [(N, out_channels, 16, 16), (N, out_channels, 8, 8),
                       (N, out_channels, 4, 4), (N, out_channels, 2, 2)]
    for o, r, es in zip(outs, refs, expected_shapes):
        assert o.shape == es, (o.shape, es)
        np.testing.assert_allclose(np.asarray(o, dtype=np.float32),
                                   np.asarray(r, dtype=np.float32),
                                   rtol=2e-2, atol=2e-2)

    print("KERNEL_OK")
</pallas_src>

<mosaic_0001>
module attributes {stable_mosaic.version = 11 : i64} {
  func.func @_mm_bias_kernel(%arg0: i32, %arg1: memref<512x4xbf16, #tpu.memory_space<vmem>>, %arg2: memref<4x32xbf16, #tpu.memory_space<vmem>>, %arg3: memref<1x32xf32, #tpu.memory_space<vmem>>, %arg4: memref<512x32xbf16, #tpu.memory_space<vmem>>) attributes {dimension_semantics = [#tpu.dimension_semantics<parallel>], iteration_bounds = array<i64: 1>, scalar_prefetch = 0 : i64, scratch_operands = 0 : i64, tpu.core_type = #tpu.core_type<tc>, window_params = [{transform_indices = @transform_0, window_bounds = array<i64: 512, 4>}, {pipeline_mode = #tpu.pipeline_mode<synchronous>, transform_indices = @transform_1, window_bounds = array<i64: 4, 32>}, {pipeline_mode = #tpu.pipeline_mode<synchronous>, transform_indices = @transform_2, window_bounds = array<i64: 1, 32>}, {transform_indices = @transform_3, window_bounds = array<i64: 512, 32>}]} {
    %c0 = arith.constant 0 : index
    %c0_0 = arith.constant 0 : index
    %0 = vector.load %arg1[%c0, %c0_0] : memref<512x4xbf16, #tpu.memory_space<vmem>>, vector<512x4xbf16>
    %c0_1 = arith.constant 0 : index
    %c0_2 = arith.constant 0 : index
    %1 = vector.load %arg2[%c0_1, %c0_2] : memref<4x32xbf16, #tpu.memory_space<vmem>>, vector<4x32xbf16>
    %cst = arith.constant dense<0.000000e+00> : vector<512x32xf32>
    %2 = tpu.matmul %0, %1, %cst {dimension_numbers = #tpu.dot_dimension_numbers<[1], [0], [0], [1], [0, 0, 1, 1], [], []>} : vector<512x4xbf16>, vector<4x32xbf16>, vector<512x32xf32> -> vector<512x32xf32>
    %c0_3 = arith.constant 0 : index
    %c0_4 = arith.constant 0 : index
    %3 = vector.load %arg3[%c0_3, %c0_4] : memref<1x32xf32, #tpu.memory_space<vmem>>, vector<1x32xf32>
    %4 = vector.broadcast %3 : vector<1x32xf32> to vector<512x32xf32>
    %5 = arith.addf %2, %4 : vector<512x32xf32>
    %6 = arith.truncf %5 : vector<512x32xf32> to vector<512x32xbf16>
    %c0_5 = arith.constant 0 : index
    %c0_6 = arith.constant 0 : index
    %7 = vector.load %arg4[%c0_5, %c0_6] : memref<512x32xbf16, #tpu.memory_space<vmem>>, vector<512x32xbf16>
    tpu.vector_store %arg4[%c0_5, %c0_6], %6 {strides = array<i32>} : memref<512x32xbf16, #tpu.memory_space<vmem>>, vector<512x32xbf16>,
    return
  }
  func.func @transform_0(%arg0: i32) -> (i32, i32) {
    %c0_i32 = arith.constant 0 : i32
    %c0_i32_0 = arith.constant 0 : i32
    return %arg0, %c0_i32 : i32, i32
  }
  func.func @transform_1(%arg0: i32) -> (i32, i32) {
    %c0_i32 = arith.constant 0 : i32
    %c0_i32_0 = arith.constant 0 : i32
    %c0_i32_1 = arith.constant 0 : i32
    return %c0_i32, %c0_i32_0 : i32, i32
  }
  func.func @transform_2(%arg0: i32) -> (i32, i32) {
    %c0_i32 = arith.constant 0 : i32
    %c0_i32_0 = arith.constant 0 : i32
    %c0_i32_1 = arith.constant 0 : i32
    return %c0_i32, %c0_i32_0 : i32, i32
  }
  func.func @transform_3(%arg0: i32) -> (i32, i32) {
    %c0_i32 = arith.constant 0 : i32
    %c0_i32_0 = arith.constant 0 : i32
    return %arg0, %c0_i32 : i32, i32
  }
}

</mosaic_0001>

<llo_original>
// kernel: tpu_custom_call.1
$region0: #{tpu_custom_call.1}
  #allocation0 [shape = 'u32[]', space=smem, size = 0x4, offset = 0x4, fixed_abs, tag = 'smem constant byte address 0x4 - core index']
  #allocation1 [shape = 'u32[144,128]{1,0:T(1,128)}', space=vmem, size = 0x12000, scoped, tag = 'internal scratch']
  %s0 = inlined_call_operand.vmem [shape: bf16[512,4], index: 0, kind: input, shape index: {}]
  %s1 = inlined_call_operand.vmem [shape: bf16[4,32], index: 1, kind: input, shape index: {}]
  %s2 = inlined_call_operand.vmem [shape: f32[1,32], index: 2, kind: input, shape index: {}]
  %s3 = inlined_call_operand.vmem [shape: bf16[512,32], index: 3, kind: output, shape index: {}]
  %s4 = sld [smem:[#allocation0]]
  $region22: #{tpu_custom_call.1} parent=0
    _
  %s6 = ssub.s32 1, %s4
  %s7 = scalar_select 0, %s6, %s4
  // Predicated region
  $region2: #{tpu_custom_call.1} parent=0 // pred_check
    _
  $region3: #{tpu_custom_call.1} parent=0 // pred_check_branch
    %9 = sbr.rel (0) target = $region5
  $region4: #{tpu_custom_call.1} parent=0 // pred_region
    _
  $region5: #{tpu_custom_call.1} parent=0 // pred_fallthru
    _
  // Predicated region
  $region6: #{tpu_custom_call.1} parent=0 // pred_check
    _
  $region7: #{tpu_custom_call.1} parent=0 // pred_check_branch
    %11 = sbr.rel (0) target = $region9
  $region8: #{tpu_custom_call.1} parent=0 // pred_region
    _
  $region9: #{tpu_custom_call.1} parent=0 // pred_fallthru
    _
  // Predicated region
  $region10: #{tpu_custom_call.1} parent=0 // pred_check
    _
  $region11: #{tpu_custom_call.1} parent=0 // pred_check_branch
    %13 = sbr.rel (0) target = $region13
  $region12: #{tpu_custom_call.1} parent=0 // pred_region
    _
  $region13: #{tpu_custom_call.1} parent=0 // pred_fallthru
    _
  %v15 = vld [vmem:[%s0] sm:$0xf]
  %v16 = vld [vmem:[%s0 + $0x4] sm:$0xf]
  %v17 = vld [vmem:[%s0 + $0x8] sm:$0xf]
  %v18 = vld [vmem:[%s0 + $0xc] sm:$0xf]
  %v19 = vld [vmem:[%s0 + $0x10] sm:$0xf]
  %v20 = vld [vmem:[%s0 + $0x14] sm:$0xf]
  %v21 = vld [vmem:[%s0 + $0x18] sm:$0xf]
  %v22 = vld [vmem:[%s0 + $0x1c] sm:$0xf]
  %v23 = vld [vmem:[%s0 + $0x20] sm:$0xf]
  %v24 = vld [vmem:[%s0 + $0x24] sm:$0xf]
  %v25 = vld [vmem:[%s0 + $0x28] sm:$0xf]
  %v26 = vld [vmem:[%s0 + $0x2c] sm:$0xf]
  %v27 = vld [vmem:[%s0 + $0x30] sm:$0xf]
  %v28 = vld [vmem:[%s0 + $0x34] sm:$0xf]
  %v29 = vld [vmem:[%s0 + $0x38] sm:$0xf]
  %v30 = vld [vmem:[%s0 + $0x3c] sm:$0xf]
  %v31 = vld [vmem:[%s0 + $0x40] sm:$0xf]
  %v32 = vld [vmem:[%s0 + $0x44] sm:$0xf]
  %v33 = vld [vmem:[%s0 + $0x48] sm:$0xf]
  %v34 = vld [vmem:[%s0 + $0x4c] sm:$0xf]
  %v35 = vld [vmem:[%s0 + $0x50] sm:$0xf]
  %v36 = vld [vmem:[%s0 + $0x54] sm:$0xf]
  %v37 = vld [vmem:[%s0 + $0x58] sm:$0xf]
  %v38 = vld [vmem:[%s0 + $0x5c] sm:$0xf]
  %v39 = vld [vmem:[%s0 + $0x60] sm:$0xf]
  %v40 = vld [vmem:[%s0 + $0x64] sm:$0xf]
  %v41 = vld [vmem:[%s0 + $0x68] sm:$0xf]
  %v42 = vld [vmem:[%s0 + $0x6c] sm:$0xf]
  %v43 = vld [vmem:[%s0 + $0x70] sm:$0xf]
  %v44 = vld [vmem:[%s0 + $0x74] sm:$0xf]
  %v45 = vld [vmem:[%s0 + $0x78] sm:$0xf]
  %v46 = vld [vmem:[%s0 + $0x7c] sm:$0xf]
  %v47 = vld [vmem:[%s0 + $0x80] sm:$0xf]
  %v48 = vld [vmem:[%s0 + $0x84] sm:$0xf]
  %v49 = vld [vmem:[%s0 + $0x88] sm:$0xf]
  %v50 = vld [vmem:[%s0 + $0x8c] sm:$0xf]
  %v51 = vld [vmem:[%s0 + $0x90] sm:$0xf]
  %v52 = vld [vmem:[%s0 + $0x94] sm:$0xf]
  %v53 = vld [vmem:[%s0 + $0x98] sm:$0xf]
  %v54 = vld [vmem:[%s0 + $0x9c] sm:$0xf]
  %v55 = vld [vmem:[%s0 + $0xa0] sm:$0xf]
  %v56 = vld [vmem:[%s0 + $0xa4] sm:$0xf]
  %v57 = vld [vmem:[%s0 + $0xa8] sm:$0xf]
  %v58 = vld [vmem:[%s0 + $0xac] sm:$0xf]
  %v59 = vld [vmem:[%s0 + $0xb0] sm:$0xf]
  %v60 = vld [vmem:[%s0 + $0xb4] sm:$0xf]
  %v61 = vld [vmem:[%s0 + $0xb8] sm:$0xf]
  %v62 = vld [vmem:[%s0 + $0xbc] sm:$0xf]
  %v63 = vld [vmem:[%s0 + $0xc0] sm:$0xf]
  %v64 = vld [vmem:[%s0 + $0xc4] sm:$0xf]
  %v65 = vld [vmem:[%s0 + $0xc8] sm:$0xf]
  %v66 = vld [vmem:[%s0 + $0xcc] sm:$0xf]
  %v67 = vld [vmem:[%s0 + $0xd0] sm:$0xf]
  %v68 = vld [vmem:[%s0 + $0xd4] sm:$0xf]
  %v69 = vld [vmem:[%s0 + $0xd8] sm:$0xf]
  %v70 = vld [vmem:[%s0 + $0xdc] sm:$0xf]
  %v71 = vld [vmem:[%s0 + $0xe0] sm:$0xf]
  %v72 = vld [vmem:[%s0 + $0xe4] sm:$0xf]
  %v73 = vld [vmem:[%s0 + $0xe8] sm:$0xf]
  %v74 = vld [vmem:[%s0 + $0xec] sm:$0xf]
  %v75 = vld [vmem:[%s0 + $0xf0] sm:$0xf]
  %v76 = vld [vmem:[%s0 + $0xf4] sm:$0xf]
  %v77 = vld [vmem:[%s0 + $0xf8] sm:$0xf]
  %v78 = vld [vmem:[%s0 + $0xfc] sm:$0xf]
  %v79 = vld [vmem:[%s1] sm:$0x3]
  %v80 = vld [vmem:[%s2] sm:$0x1]
  %v82 = vlaneseq
  %v83 = vshrl.u32 %v82, 7
  %v84 = vsub.s32 0, %v83
  %v85 = vrot.slane %v80, %v84
  %v151 = vunpack.c.l.b16 %v15
  %v152 = vunpack.c.l.b16 %v16
  %v153 = vunpack.c.l.b16 %v17
  %v154 = vunpack.c.l.b16 %v18
  %v155 = vunpack.c.l.b16 %v19
  %v156 = vunpack.c.l.b16 %v20
  %v157 = vunpack.c.l.b16 %v21
  %v158 = vunpack.c.l.b16 %v22
  %v159 = vunpack.c.l.b16 %v23
  %v160 = vunpack.c.l.b16 %v24
  %v161 = vunpack.c.l.b16 %v25
  %v162 = vunpack.c.l.b16 %v26
  %v163 = vunpack.c.l.b16 %v27
  %v164 = vunpack.c.l.b16 %v28
  %v165 = vunpack.c.l.b16 %v29
  %v166 = vunpack.c.l.b16 %v30
  %v167 = vunpack.c.l.b16 %v31
  %v168 = vunpack.c.l.b16 %v32
  %v169 = vunpack.c.l.b16 %v33
  %v170 = vunpack.c.l.b16 %v34
  %v171 = vunpack.c.l.b16 %v35
  %v172 = vunpack.c.l.b16 %v36
  %v173 = vunpack.c.l.b16 %v37
  %v174 = vunpack.c.l.b16 %v38
  %v175 = vunpack.c.l.b16 %v39
  %v176 = vunpack.c.l.b16 %v40
  %v177 = vunpack.c.l.b16 %v41
  %v178 = vunpack.c.l.b16 %v42
  %v179 = vunpack.c.l.b16 %v43
  %v180 = vunpack.c.l.b16 %v44
  %v181 = vunpack.c.l.b16 %v45
  %v182 = vunpack.c.l.b16 %v46
  %v183 = vunpack.c.l.b16 %v47
  %v184 = vunpack.c.l.b16 %v48
  %v185 = vunpack.c.l.b16 %v49
  %v186 = vunpack.c.l.b16 %v50
  %v187 = vunpack.c.l.b16 %v51
  %v188 = vunpack.c.l.b16 %v52
  %v189 = vunpack.c.l.b16 %v53
  %v190 = vunpack.c.l.b16 %v54
  %v191 = vunpack.c.l.b16 %v55
  %v192 = vunpack.c.l.b16 %v56
  %v193 = vunpack.c.l.b16 %v57
  %v194 = vunpack.c.l.b16 %v58
  %v195 = vunpack.c.l.b16 %v59
  %v196 = vunpack.c.l.b16 %v60
  %v197 = vunpack.c.l.b16 %v61
  %v198 = vunpack.c.l.b16 %v62
  %v199 = vunpack.c.l.b16 %v63
  %v200 = vunpack.c.l.b16 %v64
  %v201 = vunpack.c.l.b16 %v65
  %v202 = vunpack.c.l.b16 %v66
  %v203 = vunpack.c.l.b16 %v67
  %v204 = vunpack.c.l.b16 %v68
  %v205 = vunpack.c.l.b16 %v69
  %v206 = vunpack.c.l.b16 %v70
  %v207 = vunpack.c.l.b16 %v71
  %v208 = vunpack.c.l.b16 %v72
  %v209 = vunpack.c.l.b16 %v73
  %v210 = vunpack.c.l.b16 %v74
  %v211 = vunpack.c.l.b16 %v75
  %v212 = vunpack.c.l.b16 %v76
  %v213 = vunpack.c.l.b16 %v77
  %v214 = vunpack.c.l.b16 %v78
  %v215 = vpack.c.b16 %v152, %v151
  %v216 = vpack.c.b16 %v154, %v153
  %v217 = vpack.c.b16 %v156, %v155
  %v218 = vpack.c.b16 %v158, %v157
  %v219 = vpack.c.b16 %v160, %v159
  %v220 = vpack.c.b16 %v162, %v161
  %v221 = vpack.c.b16 %v164, %v163
  %v222 = vpack.c.b16 %v166, %v165
  %v223 = vpack.c.b16 %v168, %v167
  %v224 = vpack.c.b16 %v170, %v169
  %v225 = vpack.c.b16 %v172, %v171
  %v226 = vpack.c.b16 %v174, %v173
  %v227 = vpack.c.b16 %v176, %v175
  %v228 = vpack.c.b16 %v178, %v177
  %v229 = vpack.c.b16 %v180, %v179
  %v230 = vpack.c.b16 %v182, %v181
  %v231 = vpack.c.b16 %v184, %v183
  %v232 = vpack.c.b16 %v186, %v185
  %v233 = vpack.c.b16 %v188, %v187
  %v234 = vpack.c.b16 %v190, %v189
  %v235 = vpack.c.b16 %v192, %v191
  %v236 = vpack.c.b16 %v194, %v193
  %v237 = vpack.c.b16 %v196, %v195
  %v238 = vpack.c.b16 %v198, %v197
  %v239 = vpack.c.b16 %v200, %v199
  %v240 = vpack.c.b16 %v202, %v201
  %v241 = vpack.c.b16 %v204, %v203
  %v242 = vpack.c.b16 %v206, %v205
  %v243 = vpack.c.b16 %v208, %v207
  %v244 = vpack.c.b16 %v210, %v209
  %v245 = vpack.c.b16 %v212, %v211
  %v246 = vpack.c.b16 %v214, %v213
  %vm247 = vcmask 31744
  %v249 = vsel %vm247, %v215, 0
  %v252 = vsel %vm247, %v216, 0
  %v255 = vsel %vm247, %v217, 0
  %v258 = vsel %vm247, %v218, 0
  %v261 = vsel %vm247, %v219, 0
  %v264 = vsel %vm247, %v220, 0
  %v267 = vsel %vm247, %v221, 0
  %v270 = vsel %vm247, %v222, 0
  %v273 = vsel %vm247, %v223, 0
  %v276 = vsel %vm247, %v224, 0
  %v279 = vsel %vm247, %v225, 0
  %v282 = vsel %vm247, %v226, 0
  %v285 = vsel %vm247, %v227, 0
  %v288 = vsel %vm247, %v228, 0
  %v291 = vsel %vm247, %v229, 0
  %v294 = vsel %vm247, %v230, 0
  %v297 = vsel %vm247, %v231, 0
  %v300 = vsel %vm247, %v232, 0
  %v303 = vsel %vm247, %v233, 0
  %v306 = vsel %vm247, %v234, 0
  %v309 = vsel %vm247, %v235, 0
  %v312 = vsel %vm247, %v236, 0
  %v315 = vsel %vm247, %v237, 0
  %v318 = vsel %vm247, %v238, 0
  %v321 = vsel %vm247, %v239, 0
  %v324 = vsel %vm247, %v240, 0
  %v327 = vsel %vm247, %v241, 0
  %v330 = vsel %vm247, %v242, 0
  %v333 = vsel %vm247, %v243, 0
  %v336 = vsel %vm247, %v244, 0
  %v339 = vsel %vm247, %v245, 0
  %v342 = vsel %vm247, %v246, 0
  %vm344 = vcmask 1041408
  %v346 = vsel %vm344, %v79, 0
  %348 = vmatprep.subr.bf16.mxu0 0
  %349 = vmatpush1.bf16.msra.mxu0 %v346
  %350 = vmatprep.subr.bf16.mxu0 0
  %351 = vmatpush1.bf16.msra.mxu0 0
  %352 = vmatprep.subr.bf16.mxu0 0
  %353 = vmatpush1.bf16.msra.mxu0 0
  %354 = vmatprep.subr.bf16.mxu0 0
  %355 = vmatpush1.bf16.msra.mxu0 0
  %356 = vmatprep.subr.bf16.mxu0 0
  %357 = vmatpush1.bf16.msra.mxu0 0
  %358 = vmatprep.subr.bf16.mxu0 0
  %359 = vmatpush1.bf16.msra.mxu0 0
  %360 = vmatprep.subr.bf16.mxu0 0
  %361 = vmatpush1.bf16.msra.mxu0 0
  %362 = vmatprep.subr.bf16.mxu0 0
  %363 = vmatpush1.bf16.msra.mxu0 0
  %364 = vmatprep.subr.bf16.mxu0 0
  %365 = vmatpush1.bf16.msra.mxu0 0
  %366 = vmatprep.subr.bf16.mxu0 0
  %367 = vmatpush1.bf16.msra.mxu0 0
  %368 = vmatprep.subr.bf16.mxu0 0
  %369 = vmatpush1.bf16.msra.mxu0 0
  %370 = vmatprep.subr.bf16.mxu0 0
  %371 = vmatpush1.bf16.msra.mxu0 0
  %372 = vmatprep.subr.bf16.mxu0 0
  %373 = vmatpush1.bf16.msra.mxu0 0
  %374 = vmatprep.subr.bf16.mxu0 0
  %375 = vmatpush1.bf16.msra.mxu0 0
  %376 = vmatprep.subr.bf16.mxu0 0
  %377 = vmatpush1.bf16.msra.mxu0 0
  %378 = vmatprep.subr.bf16.mxu0 0
  %379 = vmatpush1.bf16.msra.mxu0 0
  %380 = vmatprep.mubr.bf16.mxu0 0
  %381 = vmatmul.mubr.bf16.gmra.mrb[0].mxu0 %v249
  %v382 = vpop.f32.mrb[0].mxu0
  %v383 = vadd.f32 %v85, %v382
  %v384 = vpop.f32.mrb[0].mxu0
  %v385 = vpop.f32.mrb[0].mxu0
  %v386 = vadd.f32 %v85, %v385
  %v387 = vpop.f32.mrb[0].mxu0
  %388 = vmatprep.mubr.bf16.mxu0 0
  %389 = vmatmul.mubr.bf16.gmra.mrb[0].mxu0 %v252
  %v390 = vpop.f32.mrb[0].mxu0
  %v391 = vadd.f32 %v85, %v390
  %v392 = vpop.f32.mrb[0].mxu0
  %v393 = vpop.f32.mrb[0].mxu0
  %v394 = vadd.f32 %v85, %v393
  %v395 = vpop.f32.mrb[0].mxu0
  %396 = vmatprep.mubr.bf16.mxu0 0
  %397 = vmatmul.mubr.bf16.gmra.mrb[0].mxu0 %v255
  %v398 = vpop.f32.mrb[0].mxu0
  %v399 = vadd.f32 %v85, %v398
  %v400 = vpop.f32.mrb[0].mxu0
  %v401 = vpop.f32.mrb[0].mxu0
  %v402 = vadd.f32 %v85, %v401
  %v403 = vpop.f32.mrb[0].mxu0
  %404 = vmatprep.mubr.bf16.mxu0 0
  %405 = vmatmul.mubr.bf16.gmra.mrb[0].mxu0 %v258
  %v406 = vpop.f32.mrb[0].mxu0
  %v407 = vadd.f32 %v85, %v406
  %v408 = vpop.f32.mrb[0].mxu0
  %v409 = vpop.f32.mrb[0].mxu0
  %v410 = vadd.f32 %v85, %v409
  %v411 = vpop.f32.mrb[0].mxu0
  %412 = vmatprep.mubr.bf16.mxu0 0
  %413 = vmatmul.mubr.bf16.gmra.mrb[0].mxu0 %v261
  %v414 = vpop.f32.mrb[0].mxu0
  %v415 = vadd.f32 %v85, %v414
  %v416 = vpop.f32.mrb[0].mxu0
  %v417 = vpop.f32.mrb[0].mxu0
  %v418 = vadd.f32 %v85, %v417
  %v419 = vpop.f32.mrb[0].mxu0
  %420 = vmatprep.mubr.bf16.mxu0 0
  %421 = vmatmul.mubr.bf16.gmra.mrb[0].mxu0 %v264
  %v422 = vpop.f32.mrb[0].mxu0
  %v423 = vadd.f32 %v85, %v422
  %v424 = vpop.f32.mrb[0].mxu0
  %v425 = vpop.f32.mrb[0].mxu0
  %v426 = vadd.f32 %v85, %v425
  %v427 = vpop.f32.mrb[0].mxu0
  %428 = vmatprep.mubr.bf16.mxu0 0
  %429 = vmatmul.mubr.bf16.gmra.mrb[0].mxu0 %v267
  %v430 = vpop.f32.mrb[0].mxu0
  %v431 = vadd.f32 %v85, %v430
  %v432 = vpop.f32.mrb[0].mxu0
  %v433 = vpop.f32.mrb[0].mxu0
  %v434 = vadd.f32 %v85, %v433
  %v435 = vpop.f32.mrb[0].mxu0
  %436 = vmatprep.mubr.bf16.mxu0 0
  %437 = vmatmul.mubr.bf16.gmra.mrb[0].mxu0 %v270
  %v438 = vpop.f32.mrb[0].mxu0
  %v439 = vadd.f32 %v85, %v438
  %v440 = vpop.f32.mrb[0].mxu0
  %v441 = vpop.f32.mrb[0].mxu0
  %v442 = vadd.f32 %v85, %v441
  %v443 = vpop.f32.mrb[0].mxu0
  %444 = vmatprep.mubr.bf16.mxu0 0
  %445 = vmatmul.mubr.bf16.gmra.mrb[0].mxu0 %v273
  %v446 = vpop.f32.mrb[0].mxu0
  %v447 = vadd.f32 %v85, %v446
  %v448 = vpop.f32.mrb[0].mxu0
  %v449 = vpop.f32.mrb[0].mxu0
  %v450 = vadd.f32 %v85, %v449
  %v451 = vpop.f32.mrb[0].mxu0
  %452 = vmatprep.mubr.bf16.mxu0 0
  %453 = vmatmul.mubr.bf16.gmra.mrb[0].mxu0 %v276
  %v454 = vpop.f32.mrb[0].mxu0
  %v455 = vadd.f32 %v85, %v454
  %v456 = vpop.f32.mrb[0].mxu0
  %v457 = vpop.f32.mrb[0].mxu0
  %v458 = vadd.f32 %v85, %v457
  %v459 = vpop.f32.mrb[0].mxu0
  %460 = vmatprep.mubr.bf16.mxu0 0
  %461 = vmatmul.mubr.bf16.gmra.mrb[0].mxu0 %v279
  %v462 = vpop.f32.mrb[0].mxu0
  %v463 = vadd.f32 %v85, %v462
  %v464 = vpop.f32.mrb[0].mxu0
  %v465 = vpop.f32.mrb[0].mxu0
  %v466 = vadd.f32 %v85, %v465
  %v467 = vpop.f32.mrb[0].mxu0
  %468 = vmatprep.mubr.bf16.mxu0 0
  %469 = vmatmul.mubr.bf16.gmra.mrb[0].mxu0 %v282
  %v470 = vpop.f32.mrb[0].mxu0
  %v471 = vadd.f32 %v85, %v470
  %v472 = vpop.f32.mrb[0].mxu0
  %v473 = vpop.f32.mrb[0].mxu0
  %v474 = vadd.f32 %v85, %v473
  %v475 = vpop.f32.mrb[0].mxu0
  %476 = vmatprep.mubr.bf16.mxu0 0
  %477 = vmatmul.mubr.bf16.gmra.mrb[0].mxu0 %v285
  %v478 = vpop.f32.mrb[0].mxu0
  %v479 = vadd.f32 %v85, %v478
  %v480 = vpop.f32.mrb[0].mxu0
  %v481 = vpop.f32.mrb[0].mxu0
  %v482 = vadd.f32 %v85, %v481
  %v483 = vpop.f32.mrb[0].mxu0
  %484 = vmatprep.mubr.bf16.mxu0 0
  %485 = vmatmul.mubr.bf16.gmra.mrb[0].mxu0 %v288
  %v486 = vpop.f32.mrb[0].mxu0
  %v487 = vadd.f32 %v85, %v486
  %v488 = vpop.f32.mrb[0].mxu0
  %v489 = vpop.f32.mrb[0].mxu0
  %v490 = vadd.f32 %v85, %v489
  %v491 = vpop.f32.mrb[0].mxu0
  %492 = vmatprep.mubr.bf16.mxu0 0
  %493 = vmatmul.mubr.bf16.gmra.mrb[0].mxu0 %v291
  %v494 = vpop.f32.mrb[0].mxu0
  %v495 = vadd.f32 %v85, %v494
  %v496 = vpop.f32.mrb[0].mxu0
  %v497 = vpop.f32.mrb[0].mxu0
  %v498 = vadd.f32 %v85, %v497
  %v499 = vpop.f32.mrb[0].mxu0
  %500 = vmatprep.mubr.bf16.mxu0 0
  %501 = vmatmul.mubr.bf16.gmra.mrb[0].mxu0 %v294
  %v502 = vpop.f32.mrb[0].mxu0
  %v503 = vadd.f32 %v85, %v502
  %v504 = vpop.f32.mrb[0].mxu0
  %v505 = vpop.f32.mrb[0].mxu0
  %v506 = vadd.f32 %v85, %v505
  %v507 = vpop.f32.mrb[0].mxu0
  %508 = vmatprep.mubr.bf16.mxu0 0
  %509 = vmatmul.mubr.bf16.gmra.mrb[0].mxu0 %v297
  %v510 = vpop.f32.mrb[0].mxu0
  %v511 = vadd.f32 %v85, %v510
  %v512 = vpop.f32.mrb[0].mxu0
  %v513 = vpop.f32.mrb[0].mxu0
  %v514 = vadd.f32 %v85, %v513
  %v515 = vpop.f32.mrb[0].mxu0
  %516 = vmatprep.mubr.bf16.mxu0 0
  %517 = vmatmul.mubr.bf16.gmra.mrb[0].mxu0 %v300
  %v518 = vpop.f32.mrb[0].mxu0
  %v519 = vadd.f32 %v85, %v518
  %v520 = vpop.f32.mrb[0].mxu0
  %v521 = vpop.f32.mrb[0].mxu0
  %v522 = vadd.f32 %v85, %v521
  %v523 = vpop.f32.mrb[0].mxu0
  %524 = vmatprep.mubr.bf16.mxu0 0
  %525 = vmatmul.mubr.bf16.gmra.mrb[0].mxu0 %v303
  %v526 = vpop.f32.mrb[0].mxu0
  %v527 = vadd.f32 %v85, %v526
  %v528 = vpop.f32.mrb[0].mxu0
  %v529 = vpop.f32.mrb[0].mxu0
  %v530 = vadd.f32 %v85, %v529
  %v531 = vpop.f32.mrb[0].mxu0
  %532 = vmatprep.mubr.bf16.mxu0 0
  %533 = vmatmul.mubr.bf16.gmra.mrb[0].mxu0 %v306
  %v534 = vpop.f32.mrb[0].mxu0
  %v535 = vadd.f32 %v85, %v534
  %v536 = vpop.f32.mrb[0].mxu0
  %v537 = vpop.f32.mrb[0].mxu0
  %v538 = vadd.f32 %v85, %v537
  %v539 = vpop.f32.mrb[0].mxu0
  %540 = vmatprep.mubr.bf16.mxu0 0
  %541 = vmatmul.mubr.bf16.gmra.mrb[0].mxu0 %v309
  %v542 = vpop.f32.mrb[0].mxu0
  %v543 = vadd.f32 %v85, %v542
  %v544 = vpop.f32.mrb[0].mxu0
  %v545 = vpop.f32.mrb[0].mxu0
  %v546 = vadd.f32 %v85, %v545
  %v547 = vpop.f32.mrb[0].mxu0
  %548 = vmatprep.mubr.bf16.mxu0 0
  %549 = vmatmul.mubr.bf16.gmra.mrb[0].mxu0 %v312
  %v550 = vpop.f32.mrb[0].mxu0
  %v551 = vadd.f32 %v85, %v550
  %v552 = vpop.f32.mrb[0].mxu0
  %v553 = vpop.f32.mrb[0].mxu0
  %v554 = vadd.f32 %v85, %v553
  %v555 = vpop.f32.mrb[0].mxu0
  %556 = vmatprep.mubr.bf16.mxu0 0
  %557 = vmatmul.mubr.bf16.gmra.mrb[0].mxu0 %v315
  %v558 = vpop.f32.mrb[0].mxu0
  %v559 = vadd.f32 %v85, %v558
  %v560 = vpop.f32.mrb[0].mxu0
  %v561 = vpop.f32.mrb[0].mxu0
  %v562 = vadd.f32 %v85, %v561
  %v563 = vpop.f32.mrb[0].mxu0
  %564 = vmatprep.mubr.bf16.mxu0 0
  %565 = vmatmul.mubr.bf16.gmra.mrb[0].mxu0 %v318
  %v566 = vpop.f32.mrb[0].mxu0
  %v567 = vadd.f32 %v85, %v566
  %v568 = vpop.f32.mrb[0].mxu0
  %v569 = vpop.f32.mrb[0].mxu0
  %v570 = vadd.f32 %v85, %v569
  %v571 = vpop.f32.mrb[0].mxu0
  %572 = vmatprep.mubr.bf16.mxu0 0
  %573 = vmatmul.mubr.bf16.gmra.mrb[0].mxu0 %v321
  %v574 = vpop.f32.mrb[0].mxu0
  %v575 = vadd.f32 %v85, %v574
  %v576 = vpop.f32.mrb[0].mxu0
  %v577 = vpop.f32.mrb[0].mxu0
  %v578 = vadd.f32 %v85, %v577
  %v579 = vpop.f32.mrb[0].mxu0
  %580 = vmatprep.mubr.bf16.mxu0 0
  %581 = vmatmul.mubr.bf16.gmra.mrb[0].mxu0 %v324
  %v582 = vpop.f32.mrb[0].mxu0
  %v583 = vadd.f32 %v85, %v582
  %v584 = vpop.f32.mrb[0].mxu0
  %v585 = vpop.f32.mrb[0].mxu0
  %v586 = vadd.f32 %v85, %v585
  %v587 = vpop.f32.mrb[0].mxu0
  %588 = vmatprep.mubr.bf16.mxu0 0
  %589 = vmatmul.mubr.bf16.gmra.mrb[0].mxu0 %v327
  %v590 = vpop.f32.mrb[0].mxu0
  %v591 = vadd.f32 %v85, %v590
  %v592 = vpop.f32.mrb[0].mxu0
  %v593 = vpop.f32.mrb[0].mxu0
  %v594 = vadd.f32 %v85, %v593
  %v595 = vpop.f32.mrb[0].mxu0
  %596 = vmatprep.mubr.bf16.mxu0 0
  %597 = vmatmul.mubr.bf16.gmra.mrb[0].mxu0 %v330
  %v598 = vpop.f32.mrb[0].mxu0
  %v599 = vadd.f32 %v85, %v598
  %v600 = vpop.f32.mrb[0].mxu0
  %v601 = vpop.f32.mrb[0].mxu0
  %v602 = vadd.f32 %v85, %v601
  %v603 = vpop.f32.mrb[0].mxu0
  %604 = vmatprep.mubr.bf16.mxu0 0
  %605 = vmatmul.mubr.bf16.gmra.mrb[0].mxu0 %v333
  %v606 = vpop.f32.mrb[0].mxu0
  %v607 = vadd.f32 %v85, %v606
  %v608 = vpop.f32.mrb[0].mxu0
  %v609 = vpop.f32.mrb[0].mxu0
  %v610 = vadd.f32 %v85, %v609
  %v611 = vpop.f32.mrb[0].mxu0
  %612 = vmatprep.mubr.bf16.mxu0 0
  %613 = vmatmul.mubr.bf16.gmra.mrb[0].mxu0 %v336
  %v614 = vpop.f32.mrb[0].mxu0
  %v615 = vadd.f32 %v85, %v614
  %v616 = vpop.f32.mrb[0].mxu0
  %v617 = vpop.f32.mrb[0].mxu0
  %v618 = vadd.f32 %v85, %v617
  %v619 = vpop.f32.mrb[0].mxu0
  %620 = vmatprep.mubr.bf16.mxu0 0
  %621 = vmatmul.mubr.bf16.gmra.mrb[0].mxu0 %v339
  %v622 = vpop.f32.mrb[0].mxu0
  %v623 = vadd.f32 %v85, %v622
  %v624 = vpop.f32.mrb[0].mxu0
  %v625 = vpop.f32.mrb[0].mxu0
  %v626 = vadd.f32 %v85, %v625
  %v627 = vpop.f32.mrb[0].mxu0
  %628 = vmatprep.mubr.bf16.mxu0 0
  %629 = vmatmul.mubr.bf16.gmra.mrb[0].mxu0 %v342
  %v630 = vpop.f32.mrb[0].mxu0
  %v631 = vadd.f32 %v85, %v630
  %v632 = vpop.f32.mrb[0].mxu0
  %v633 = vpop.f32.mrb[0].mxu0
  %v634 = vadd.f32 %v85, %v633
  %v635 = vpop.f32.mrb[0].mxu0
  %636 = vdwg.mxu0
  %v637 = vpack.c.bf16 %v386, %v383
  %v638 = vpack.c.bf16 %v394, %v391
  %v639 = vpack.c.bf16 %v402, %v399
  %v640 = vpack.c.bf16 %v410, %v407
  %v641 = vpack.c.bf16 %v418, %v415
  %v642 = vpack.c.bf16 %v426, %v423
  %v643 = vpack.c.bf16 %v434, %v431
  %v644 = vpack.c.bf16 %v442, %v439
  %v645 = vpack.c.bf16 %v450, %v447
  %v646 = vpack.c.bf16 %v458, %v455
  %v647 = vpack.c.bf16 %v466, %v463
  %v648 = vpack.c.bf16 %v474, %v471
  %v649 = vpack.c.bf16 %v482, %v479
  %v650 = vpack.c.bf16 %v490, %v487
  %v651 = vpack.c.bf16 %v498, %v495
  %v652 = vpack.c.bf16 %v506, %v503
  %v653 = vpack.c.bf16 %v514, %v511
  %v654 = vpack.c.bf16 %v522, %v519
  %v655 = vpack.c.bf16 %v530, %v527
  %v656 = vpack.c.bf16 %v538, %v535
  %v657 = vpack.c.bf16 %v546, %v543
  %v658 = vpack.c.bf16 %v554, %v551
  %v659 = vpack.c.bf16 %v562, %v559
  %v660 = vpack.c.bf16 %v570, %v567
  %v661 = vpack.c.bf16 %v578, %v575
  %v662 = vpack.c.bf16 %v586, %v583
  %v663 = vpack.c.bf16 %v594, %v591
  %v664 = vpack.c.bf16 %v602, %v599
  %v665 = vpack.c.bf16 %v610, %v607
  %v666 = vpack.c.bf16 %v618, %v615
  %v667 = vpack.c.bf16 %v626, %v623
  %v668 = vpack.c.bf16 %v634, %v631
  %v701 = vunpack.c.l.b16 %v637
  %v702 = vunpack.c.h.b16 %v637
  %v703 = vunpack.c.l.b16 %v638
  %v704 = vunpack.c.h.b16 %v638
  %v705 = vunpack.c.l.b16 %v639
  %v706 = vunpack.c.h.b16 %v639
  %v707 = vunpack.c.l.b16 %v640
  %v708 = vunpack.c.h.b16 %v640
  %v709 = vunpack.c.l.b16 %v641
  %v710 = vunpack.c.h.b16 %v641
  %v711 = vunpack.c.l.b16 %v642
  %v712 = vunpack.c.h.b16 %v642
  %v713 = vunpack.c.l.b16 %v643
  %v714 = vunpack.c.h.b16 %v643
  %v715 = vunpack.c.l.b16 %v644
  %v716 = vunpack.c.h.b16 %v644
  %v717 = vunpack.c.l.b16 %v645
  %v718 = vunpack.c.h.b16 %v645
  %v719 = vunpack.c.l.b16 %v646
  %v720 = vunpack.c.h.b16 %v646
  %v721 = vunpack.c.l.b16 %v647
  %v722 = vunpack.c.h.b16 %v647
  %v723 = vunpack.c.l.b16 %v648
  %v724 = vunpack.c.h.b16 %v648
  %v725 = vunpack.c.l.b16 %v649
  %v726 = vunpack.c.h.b16 %v649
  %v727 = vunpack.c.l.b16 %v650
  %v728 = vunpack.c.h.b16 %v650
  %v729 = vunpack.c.l.b16 %v651
  %v730 = vunpack.c.h.b16 %v651
  %v731 = vunpack.c.l.b16 %v652
  %v732 = vunpack.c.h.b16 %v652
  %v733 = vunpack.c.l.b16 %v653
  %v734 = vunpack.c.h.b16 %v653
  %v735 = vunpack.c.l.b16 %v654
  %v736 = vunpack.c.h.b16 %v654
  %v737 = vunpack.c.l.b16 %v655
  %v738 = vunpack.c.h.b16 %v655
  %v739 = vunpack.c.l.b16 %v656
  %v740 = vunpack.c.h.b16 %v656
  %v741 = vunpack.c.l.b16 %v657
  %v742 = vunpack.c.h.b16 %v657
  %v743 = vunpack.c.l.b16 %v658
  %v744 = vunpack.c.h.b16 %v658
  %v745 = vunpack.c.l.b16 %v659
  %v746 = vunpack.c.h.b16 %v659
  %v747 = vunpack.c.l.b16 %v660
  %v748 = vunpack.c.h.b16 %v660
  %v749 = vunpack.c.l.b16 %v661
  %v750 = vunpack.c.h.b16 %v661
  %v751 = vunpack.c.l.b16 %v662
  %v752 = vunpack.c.h.b16 %v662
  %v753 = vunpack.c.l.b16 %v663
  %v754 = vunpack.c.h.b16 %v663
  %v755 = vunpack.c.l.b16 %v664
  %v756 = vunpack.c.h.b16 %v664
  %v757 = vunpack.c.l.b16 %v665
  %v758 = vunpack.c.h.b16 %v665
  %v759 = vunpack.c.l.b16 %v666
  %v760 = vunpack.c.h.b16 %v666
  %v761 = vunpack.c.l.b16 %v667
  %v762 = vunpack.c.h.b16 %v667
  %v763 = vunpack.c.l.b16 %v668
  %v764 = vunpack.c.h.b16 %v668
  %v765 = vpack.c.b16 %v701, %v701
  %v766 = vpack.c.b16 %v702, %v702
  %v767 = vpack.c.b16 %v703, %v703
  %v768 = vpack.c.b16 %v704, %v704
  %v769 = vpack.c.b16 %v705, %v705
  %v770 = vpack.c.b16 %v706, %v706
  %v771 = vpack.c.b16 %v707, %v707
  %v772 = vpack.c.b16 %v708, %v708
  %v773 = vpack.c.b16 %v709, %v709
  %v774 = vpack.c.b16 %v710, %v710
  %v775 = vpack.c.b16 %v711, %v711
  %v776 = vpack.c.b16 %v712, %v712
  %v777 = vpack.c.b16 %v713, %v713
  %v778 = vpack.c.b16 %v714, %v714
  %v779 = vpack.c.b16 %v715, %v715
  %v780 = vpack.c.b16 %v716, %v716
  %v781 = vpack.c.b16 %v717, %v717
  %v782 = vpack.c.b16 %v718, %v718
  %v783 = vpack.c.b16 %v719, %v719
  %v784 = vpack.c.b16 %v720, %v720
  %v785 = vpack.c.b16 %v721, %v721
  %v786 = vpack.c.b16 %v722, %v722
  %v787 = vpack.c.b16 %v723, %v723
  %v788 = vpack.c.b16 %v724, %v724
  %v789 = vpack.c.b16 %v725, %v725
  %v790 = vpack.c.b16 %v726, %v726
  %v791 = vpack.c.b16 %v727, %v727
  %v792 = vpack.c.b16 %v728, %v728
  %v793 = vpack.c.b16 %v729, %v729
  %v794 = vpack.c.b16 %v730, %v730
  %v795 = vpack.c.b16 %v731, %v731
  %v796 = vpack.c.b16 %v732, %v732
  %v797 = vpack.c.b16 %v733, %v733
  %v798 = vpack.c.b16 %v734, %v734
  %v799 = vpack.c.b16 %v735, %v735
  %v800 = vpack.c.b16 %v736, %v736
  %v801 = vpack.c.b16 %v737, %v737
  %v802 = vpack.c.b16 %v738, %v738
  %v803 = vpack.c.b16 %v739, %v739
  %v804 = vpack.c.b16 %v740, %v740
  %v805 = vpack.c.b16 %v741, %v741
  %v806 = vpack.c.b16 %v742, %v742
  %v807 = vpack.c.b16 %v743, %v743
  %v808 = vpack.c.b16 %v744, %v744
  %v809 = vpack.c.b16 %v745, %v745
  %v810 = vpack.c.b16 %v746, %v746
  %v811 = vpack.c.b16 %v747, %v747
  %v812 = vpack.c.b16 %v748, %v748
  %v813 = vpack.c.b16 %v749, %v749
  %v814 = vpack.c.b16 %v750, %v750
  %v815 = vpack.c.b16 %v751, %v751
  %v816 = vpack.c.b16 %v752, %v752
  %v817 = vpack.c.b16 %v753, %v753
  %v818 = vpack.c.b16 %v754, %v754
  %v819 = vpack.c.b16 %v755, %v755
  %v820 = vpack.c.b16 %v756, %v756
  %v821 = vpack.c.b16 %v757, %v757
  %v822 = vpack.c.b16 %v758, %v758
  %v823 = vpack.c.b16 %v759, %v759
  %v824 = vpack.c.b16 %v760, %v760
  %v825 = vpack.c.b16 %v761, %v761
  %v826 = vpack.c.b16 %v762, %v762
  %v827 = vpack.c.b16 %v763, %v763
  %v828 = vpack.c.b16 %v764, %v764
  %vm893 = vcmask 257024
  %894 = vst.msk [vmem:[%s3] sm:$0xf] %vm893, %v765
  %895 = vst.msk [vmem:[%s3 + $0x4] sm:$0xf] %vm893, %v766
  %896 = vst.msk [vmem:[%s3 + $0x8] sm:$0xf] %vm893, %v767
  %897 = vst.msk [vmem:[%s3 + $0xc] sm:$0xf] %vm893, %v768
  %898 = vst.msk [vmem:[%s3 + $0x10] sm:$0xf] %vm893, %v769
  %899 = vst.msk [vmem:[%s3 + $0x14] sm:$0xf] %vm893, %v770
  %900 = vst.msk [vmem:[%s3 + $0x18] sm:$0xf] %vm893, %v771
  %901 = vst.msk [vmem:[%s3 + $0x1c] sm:$0xf] %vm893, %v772
  %902 = vst.msk [vmem:[%s3 + $0x20] sm:$0xf] %vm893, %v773
  %903 = vst.msk [vmem:[%s3 + $0x24] sm:$0xf] %vm893, %v774
  %904 = vst.msk [vmem:[%s3 + $0x28] sm:$0xf] %vm893, %v775
  %905 = vst.msk [vmem:[%s3 + $0x2c] sm:$0xf] %vm893, %v776
  %906 = vst.msk [vmem:[%s3 + $0x30] sm:$0xf] %vm893, %v777
  %907 = vst.msk [vmem:[%s3 + $0x34] sm:$0xf] %vm893, %v778
  %908 = vst.msk [vmem:[%s3 + $0x38] sm:$0xf] %vm893, %v779
  %909 = vst.msk [vmem:[%s3 + $0x3c] sm:$0xf] %vm893, %v780
  %910 = vst.msk [vmem:[%s3 + $0x40] sm:$0xf] %vm893, %v781
  %911 = vst.msk [vmem:[%s3 + $0x44] sm:$0xf] %vm893, %v782
  %912 = vst.msk [vmem:[%s3 + $0x48] sm:$0xf] %vm893, %v783
  %913 = vst.msk [vmem:[%s3 + $0x4c] sm:$0xf] %vm893, %v784
  %914 = vst.msk [vmem:[%s3 + $0x50] sm:$0xf] %vm893, %v785
  %915 = vst.msk [vmem:[%s3 + $0x54] sm:$0xf] %vm893, %v786
  %916 = vst.msk [vmem:[%s3 + $0x58] sm:$0xf] %vm893, %v787
  %917 = vst.msk [vmem:[%s3 + $0x5c] sm:$0xf] %vm893, %v788
  %918 = vst.msk [vmem:[%s3 + $0x60] sm:$0xf] %vm893, %v789
  %919 = vst.msk [vmem:[%s3 + $0x64] sm:$0xf] %vm893, %v790
  %920 = vst.msk [vmem:[%s3 + $0x68] sm:$0xf] %vm893, %v791
  %921 = vst.msk [vmem:[%s3 + $0x6c] sm:$0xf] %vm893, %v792
  %922 = vst.msk [vmem:[%s3 + $0x70] sm:$0xf] %vm893, %v793
  %923 = vst.msk [vmem:[%s3 + $0x74] sm:$0xf] %vm893, %v794
  %924 = vst.msk [vmem:[%s3 + $0x78] sm:$0xf] %vm893, %v795
  %925 = vst.msk [vmem:[%s3 + $0x7c] sm:$0xf] %vm893, %v796
  %926 = vst.msk [vmem:[%s3 + $0x80] sm:$0xf] %vm893, %v797
  %927 = vst.msk [vmem:[%s3 + $0x84] sm:$0xf] %vm893, %v798
  %928 = vst.msk [vmem:[%s3 + $0x88] sm:$0xf] %vm893, %v799
  %929 = vst.msk [vmem:[%s3 + $0x8c] sm:$0xf] %vm893, %v800
  %930 = vst.msk [vmem:[%s3 + $0x90] sm:$0xf] %vm893, %v801
  %931 = vst.msk [vmem:[%s3 + $0x94] sm:$0xf] %vm893, %v802
  %932 = vst.msk [vmem:[%s3 + $0x98] sm:$0xf] %vm893, %v803
  %933 = vst.msk [vmem:[%s3 + $0x9c] sm:$0xf] %vm893, %v804
  %934 = vst.msk [vmem:[%s3 + $0xa0] sm:$0xf] %vm893, %v805
  %935 = vst.msk [vmem:[%s3 + $0xa4] sm:$0xf] %vm893, %v806
  %936 = vst.msk [vmem:[%s3 + $0xa8] sm:$0xf] %vm893, %v807
  %937 = vst.msk [vmem:[%s3 + $0xac] sm:$0xf] %vm893, %v808
  %938 = vst.msk [vmem:[%s3 + $0xb0] sm:$0xf] %vm893, %v809
  %939 = vst.msk [vmem:[%s3 + $0xb4] sm:$0xf] %vm893, %v810
  %940 = vst.msk [vmem:[%s3 + $0xb8] sm:$0xf] %vm893, %v811
  %941 = vst.msk [vmem:[%s3 + $0xbc] sm:$0xf] %vm893, %v812
  %942 = vst.msk [vmem:[%s3 + $0xc0] sm:$0xf] %vm893, %v813
  %943 = vst.msk [vmem:[%s3 + $0xc4] sm:$0xf] %vm893, %v814
  %944 = vst.msk [vmem:[%s3 + $0xc8] sm:$0xf] %vm893, %v815
  %945 = vst.msk [vmem:[%s3 + $0xcc] sm:$0xf] %vm893, %v816
  %946 = vst.msk [vmem:[%s3 + $0xd0] sm:$0xf] %vm893, %v817
  %947 = vst.msk [vmem:[%s3 + $0xd4] sm:$0xf] %vm893, %v818
  %948 = vst.msk [vmem:[%s3 + $0xd8] sm:$0xf] %vm893, %v819
  %949 = vst.msk [vmem:[%s3 + $0xdc] sm:$0xf] %vm893, %v820
  %950 = vst.msk [vmem:[%s3 + $0xe0] sm:$0xf] %vm893, %v821
  %951 = vst.msk [vmem:[%s3 + $0xe4] sm:$0xf] %vm893, %v822
  %952 = vst.msk [vmem:[%s3 + $0xe8] sm:$0xf] %vm893, %v823
  %953 = vst.msk [vmem:[%s3 + $0xec] sm:$0xf] %vm893, %v824
  %954 = vst.msk [vmem:[%s3 + $0xf0] sm:$0xf] %vm893, %v825
  %955 = vst.msk [vmem:[%s3 + $0xf4] sm:$0xf] %vm893, %v826
  %956 = vst.msk [vmem:[%s3 + $0xf8] sm:$0xf] %vm893, %v827
  %957 = vst.msk [vmem:[%s3 + $0xfc] sm:$0xf] %vm893, %v828
  // Predicated region
  $region14: #{tpu_custom_call.1} parent=0 // pred_check
    _
  $region15: #{tpu_custom_call.1} parent=0 // pred_check_branch
    %959 = sbr.rel (0) target = $region17
  $region16: #{tpu_custom_call.1} parent=0 // pred_region
    _
  $region17: #{tpu_custom_call.1} parent=0 // pred_fallthru
    _
  // Predicated region
  $region18: #{tpu_custom_call.1} parent=0 // pred_check
    _
  $region19: #{tpu_custom_call.1} parent=0 // pred_check_branch
    %961 = sbr.rel (0) target = $region21
  $region20: #{tpu_custom_call.1} parent=0 // pred_region
    _
  $region21: #{tpu_custom_call.1} parent=0 // pred_fallthru
    _

</llo_original>
